<compile_context>
chip_gen: v7x
topology: tpu7x:2x2x1
jax: 0.10.0
libtpu: 0.0.40
codegen_flags: <defaults>
</compile_context>

<pallas_src>
import jax
import jax.numpy as jnp
import numpy as np
from jax.experimental import pallas as pl
from jax.experimental.pallas import tpu as pltpu


# Below this size a Pallas launch (~microseconds + fusion barrier) dwarfs the
# copy itself; let XLA handle it natively.
_PALLAS_COPY_MIN_BYTES = 4 * 1024 * 1024


# ---------------------------------------------------------------------------
# Hot path: identity, no kernel launch (top recommendation from perf review).
# ---------------------------------------------------------------------------
def dummy_conv_forward(x, edge_index, edge_attr=None):
    """DummyConv.forward: returns x unchanged (zero-cost identity)."""
    del edge_index, edge_attr  # unused by the reference forward
    return x


# ---------------------------------------------------------------------------
# Explicit fresh-buffer path.
# ---------------------------------------------------------------------------
def _hbm_copy_kernel(x_hbm, o_hbm, sem):
    # Single contiguous DMA: stream the whole array HBM -> HBM, no VMEM
    # bounce, no vld/vst slot work, no VMEM budget touched (matters on v7x's
    # 64 MiB VMEM).  One descriptor saturates HBM BW on v5e/v6e; chunking is
    # only worth it on v7x for non-contiguous sources (not the case here).
    cp = pltpu.make_async_copy(x_hbm, o_hbm, sem)
    cp.start()
    cp.wait()


def _pallas_hbm_copy(x):
    nbytes = int(x.size) * x.dtype.itemsize
    return pl.pallas_call(
        _hbm_copy_kernel,
        out_shape=jax.ShapeDtypeStruct(x.shape, x.dtype),
        in_specs=[pl.BlockSpec(memory_space=pl.ANY)],
        out_specs=pl.BlockSpec(memory_space=pl.ANY),
        scratch_shapes=[pltpu.SemaphoreType.DMA(())],
        # Accurate memory cost for the opaque custom call: read + write.
        cost_estimate=pl.CostEstimate(
            flops=0, transcendentals=0, bytes_accessed=2 * nbytes
        ),
    )(x)


def dummy_conv_copy(x, edge_index=None, edge_attr=None, *, force_pallas=False):
    """Same semantics as forward, but materializes a fresh output buffer.

    Small tensors: plain XLA copy (fusible/elidable).  Large tensors (or
    force_pallas=True): single HBM->HBM DMA inside a Pallas kernel.
    """
    del edge_index, edge_attr
    nbytes = int(x.size) * x.dtype.itemsize
    if force_pallas or nbytes >= _PALLAS_COPY_MIN_BYTES:
        return _pallas_hbm_copy(x)
    return jnp.copy(x)


# ---------------------------------------------------------------------------
# Optional donation path: no data movement at all (metadata-only).
# Use only when the caller accepts that the input buffer is aliased/donated.
# ---------------------------------------------------------------------------
def _alias_touch_kernel(x_hbm, o_hbm):
    # Output is aliased to the input; touch pins ordering, no bytes move.
    pltpu.touch(o_hbm)


def dummy_conv_copy_donated(x, edge_index=None, edge_attr=None):
    del edge_index, edge_attr
    return pl.pallas_call(
        _alias_touch_kernel,
        out_shape=jax.ShapeDtypeStruct(x.shape, x.dtype),
        in_specs=[pl.BlockSpec(memory_space=pl.ANY)],
        out_specs=pl.BlockSpec(memory_space=pl.ANY),
        input_output_aliases={0: 0},
        cost_estimate=pl.CostEstimate(flops=0, transcendentals=0, bytes_accessed=0),
    )(x)


class DummyConvPallas:
    """Mirror of the PyTorch DummyConv module (no parameters)."""

    def __init__(self, in_channels):
        self.in_channels = in_channels  # stored but unused, as in PyTorch

    def __call__(self, x, edge_index, edge_attr=None):
        return dummy_conv_forward(x, edge_index, edge_attr)


def _bitwise_equal(a, b):
    """NaN-safe exact equality: compares raw bit patterns."""
    a = np.asarray(jax.device_get(a))
    b = np.asarray(jax.device_get(b))
    if a.shape != b.shape or a.dtype != b.dtype:
        return False
    return a.tobytes() == b.tobytes()


if __name__ == "__main__":
    key = jax.random.PRNGKey(0)
    k_x, k_e, k_a = jax.random.split(key, 3)

    num_nodes = 16
    in_channels = 4
    num_edges = 8

    x = jax.random.normal(k_x, (num_nodes, in_channels), dtype=jnp.float32)
    edge_index = jax.random.randint(
        k_e, (2, num_edges), 0, num_nodes, dtype=jnp.int32
    )
    edge_attr = jax.random.normal(k_a, (num_edges, in_channels), dtype=jnp.float32)

    model = DummyConvPallas(in_channels)

    # Hot path: identity, no kernel launch.
    out = model(x, edge_index, edge_attr)
    out = jax.block_until_ready(out)
    assert out.shape == x.shape and out.dtype == x.dtype
    assert _bitwise_equal(out, x)

    # Small-tensor copy path: plain XLA copy (no Pallas launch for 256 B).
    out_small = dummy_conv_copy(x, edge_index, edge_attr)
    out_small = jax.block_until_ready(out_small)
    assert _bitwise_equal(out_small, x)

    # Pallas HBM->HBM DMA kernel: compile and run it once (forced, so the
    # Pallas path is exercised even at this small size) and verify.
    out_copy = dummy_conv_copy(x, edge_index, edge_attr, force_pallas=True)
    out_copy = jax.block_until_ready(out_copy)
    assert out_copy.shape == x.shape and out_copy.dtype == x.dtype
    assert _bitwise_equal(out_copy, x)

    print("KERNEL_OK")
</pallas_src>

<mosaic_0001>
module attributes {stable_mosaic.version = 11 : i64} {
  func.func @_hbm_copy_kernel(%arg0: memref<16x4xf32, #tpu.memory_space<any>>, %arg1: memref<16x4xf32, #tpu.memory_space<any>>, %arg2: memref<!tpu.dma_semaphore, #tpu.memory_space<semaphore_mem>>) attributes {dimension_semantics = [], scalar_prefetch = 0 : i64, scratch_operands = 1 : i64, tpu.core_type = #tpu.core_type<tc>} {
    tpu.enqueue_dma source(%arg0 : memref<16x4xf32, #tpu.memory_space<any>>) target(%arg1 : memref<16x4xf32, #tpu.memory_space<any>>) target_semaphore(%arg2 : memref<!tpu.dma_semaphore, #tpu.memory_space<semaphore_mem>>)
    tpu.wait_dma2 semaphore(%arg2 : memref<!tpu.dma_semaphore, #tpu.memory_space<semaphore_mem>>) src(%arg0 : memref<16x4xf32, #tpu.memory_space<any>>) dst(%arg1 : memref<16x4xf32, #tpu.memory_space<any>>)
    return
  }
}

</mosaic_0001>

<llo_original>
// kernel: tpu_custom_call.1
$region0: #{tpu_custom_call.1}
  #allocation0 [shape = 'u32[]', space=smem, size = 0x4, offset = 0x4, fixed_abs, tag = 'smem constant byte address 0x4 - core index']
  #allocation1 [shape = 'u32[144,128]{1,0:T(1,128)}', space=vmem, size = 0x12000, scoped, tag = 'internal scratch']
  #allocation2 [shape = 's32[1]{0}', space=sflag, size = 0x4, scoped, tag = 'scratch operand']
  #allocation3 [shape = 's32[]', space=sflag, size = 0x4, offset = 0, fixed_abs, tag = 'sflag constant byte address 0x0 - dummy sync flag']
  %s0 = inlined_call_operand.vmem [shape: f32[16,4], index: 0, kind: input, shape index: {}]
  %s1 = inlined_call_operand.vmem [shape: f32[16,4], index: 1, kind: output, shape index: {}]
  %s2 = sld [smem:[#allocation0]]
  $region36: #{tpu_custom_call.1} parent=0
    _
  %s4 = ssub.s32 1, %s2
  %s5 = scalar_select 0, %s4, %s2
  %p7 = scmp.lt.u32.totalorder 16, 8
  %p8 = pneg %p7
  // Predicated region
  $region2: #{tpu_custom_call.1} parent=0 // pred_check
    _
  $region3: #{tpu_custom_call.1} parent=0 // pred_check_branch
    %10 = sbr.rel (%p7) target = $region5
  $region4: #{tpu_custom_call.1} parent=0 // pred_region
    %s25 = sand.u32 16, 7
    %p26 = scmp.eq.s32.totalorder %s25, 0
    // Predicated region
    $region17: #{tpu_custom_call.1} parent=4 // pred_check
      %p27 = pneg %p26
    $region18: #{tpu_custom_call.1} parent=4 // pred_check_branch
      %29 = sbr.rel (%p27) target = $region20
    $region19: #{tpu_custom_call.1} parent=4 // pred_region
      loop: start=0, step=1, limit=1
      $region21: #{tpu_custom_call.1} parent=19 // loop_pre_header
        _
      $region22: #{tpu_custom_call.1} parent=19 // loop_header
        %s31 = sphi 0, %s35
        %p32 = scmp.ge.s32.totalorder %s31, 1
        %s36 = sphi %s0, %s0
        %s37 = sphi %s1, %s1
      $region23: #{tpu_custom_call.1} parent=19 // loop_header_branch
        %34 = sbr.rel (%p32) target = $region27
      $region24: #{tpu_custom_call.1} parent=19 // loop_body
        %v38 = vld [vmem:[%s36] sm:$0xff]
        %39 = vst [vmem:[%s37] sm:$0xff] %v38
        %v40 = vld [vmem:[%s36 + $0x8] sm:$0xff]
        %41 = vst [vmem:[%s37 + $0x8] sm:$0xff] %v40
      $region25: #{tpu_custom_call.1} parent=19 // loop_footer
        %s35 = sadd.s32 1, %s31
      $region26: #{tpu_custom_call.1} parent=19 // loop_footer_branch
        %30 = sbr.rel target = $region22
      $region27: #{tpu_custom_call.1} parent=19 // loop_exit
        _
    $region20: #{tpu_custom_call.1} parent=4 // pred_fallthru
      _
    %p42 = pneg %p26
    // Predicated region
    $region28: #{tpu_custom_call.1} parent=4 // pred_check
      _
    $region29: #{tpu_custom_call.1} parent=4 // pred_check_branch
      %44 = sbr.rel (%p26) target = $region31
    $region30: #{tpu_custom_call.1} parent=4 // pred_region
      %s45 = sand.u32 16, 7
    $region31: #{tpu_custom_call.1} parent=4 // pred_fallthru
      _
  $region5: #{tpu_custom_call.1} parent=0 // pred_fallthru
    _
  // Predicated region
  $region6: #{tpu_custom_call.1} parent=0 // pred_check
    %p11 = pneg %p7
  $region7: #{tpu_custom_call.1} parent=0 // pred_check_branch
    %13 = sbr.rel (%p11) target = $region9
  $region8: #{tpu_custom_call.1} parent=0 // pred_region
    %s14 = sshllo.u32 0, 16
    loop: start=0, step=1, limit=1
    $region10: #{tpu_custom_call.1} parent=8 // loop_pre_header
      _
    $region11: #{tpu_custom_call.1} parent=8 // loop_header
      %s16 = sphi 0, %s20
      %p17 = scmp.ge.s32.totalorder %s16, 1
      %s21 = sphi %s0, %s0
      %s22 = sphi %s1, %s1
    $region12: #{tpu_custom_call.1} parent=8 // loop_header_branch
      %19 = sbr.rel (%p17) target = $region16
    $region13: #{tpu_custom_call.1} parent=8 // loop_body
      %v23 = vld [vmem:[%s21] sm:%s14]
      %24 = vst [vmem:[%s22] sm:%s14] %v23
    $region14: #{tpu_custom_call.1} parent=8 // loop_footer
      %s20 = sadd.s32 1, %s16
    $region15: #{tpu_custom_call.1} parent=8 // loop_footer_branch
      %15 = sbr.rel target = $region11
    $region16: #{tpu_custom_call.1} parent=8 // loop_exit
      _
  $region9: #{tpu_custom_call.1} parent=0 // pred_fallthru
    _
  // Predicated region
  $region32: #{tpu_custom_call.1} parent=0 // pred_check
    _
  $region33: #{tpu_custom_call.1} parent=0 // pred_check_branch
    %48 = sbr.rel (0) target = $region35
  $region34: #{tpu_custom_call.1} parent=0 // pred_region
    %49 = vsyncadd [#allocation2], 256
  $region35: #{tpu_custom_call.1} parent=0 // pred_fallthru
    _
  %s50 = smul.u32 16, 1
  %s51 = sshll.u32 %s50, 4
  %52 = dma.done [#allocation2], %s51
  %53 = vsyncmov [#allocation2]
  %s54 = vpop.sfrf %53
  %p55 = scmp.eq.s32.totalorder %s54, 0
  %p56 = pneg %p55
  %58 = shalt.err (%p56)

</llo_original>
